<compile_context>
chip_gen: v7x
topology: tpu7x:2x2x1
jax: 0.10.0
libtpu: 0.0.40
codegen_flags: <defaults>
</compile_context>

<pallas_src>
import functools

import jax
import jax.numpy as jnp
from jax.experimental import pallas as pl
from jax.experimental.pallas import tpu as pltpu

HIDDEN = 24   # fc1/fc2 width from the PyTorch module
LANE = 128    # TPU lane width; hidden / action dims padded to this in the slab
SUB = 8       # sublane granularity


def _round_up(x, m):
    return (x + m - 1) // m * m


def qnetwork_kernel(x_ref, p_ref, o_ref, *, S, r_w2, r_w3, r_b):
    dt = p_ref.dtype                             # f32 (default) or bf16 slab
    x = x_ref[...].astype(dt)                    # (TB, S)

    # Static, lane-dense views into the packed parameter slab.
    w1 = p_ref[0:S, :]                           # (S, 128)   cols >= HIDDEN are 0
    w2 = p_ref[r_w2:r_w2 + LANE, :]              # (128, 128) zero outside [0:24, 0:24]
    w3 = p_ref[r_w3:r_w3 + LANE, :]              # (128, 128) zero outside [0:24, 0:A]
    b1 = p_ref[r_b:r_b + 1, :].astype(jnp.float32)       # (1, 128)
    b2 = p_ref[r_b + 1:r_b + 2, :].astype(jnp.float32)
    b3 = p_ref[r_b + 2:r_b + 3, :].astype(jnp.float32)

    # fc1 + relu (zero-padded lanes stay exactly 0 through relu); f32 accumulate.
    h1 = jnp.maximum(jnp.dot(x, w1, preferred_element_type=jnp.float32) + b1, 0.0)
    # fc2 + relu
    h2 = jnp.maximum(
        jnp.dot(h1.astype(dt), w2, preferred_element_type=jnp.float32) + b2, 0.0)
    # fc3 (no activation). Store the full 128-lane result -> unmasked vst;
    # the wrapper slices to action_size outside the kernel.
    out = jnp.dot(h2.astype(dt), w3, preferred_element_type=jnp.float32) + b3
    o_ref[...] = out.astype(o_ref.dtype)


def pack_params(params, state_size, action_size, dtype=jnp.float32):
    """Pack w1,b1,w2,b2,w3,b3 into one contiguous (rows, 128) slab.

    Do this ONCE per parameter set (e.g. once per RL optimizer step), not per
    forward call. Use dtype=jnp.bfloat16 on v6e/v7x for the native MXU path.
    """
    s_pad = _round_up(state_size, SUB)
    r_w1 = 0
    r_w2 = r_w1 + s_pad
    r_w3 = r_w2 + LANE
    r_b = r_w3 + LANE
    rows = r_b + SUB

    slab = jnp.zeros((rows, LANE), jnp.float32)
    slab = slab.at[r_w1:r_w1 + state_size, :HIDDEN].set(params["w1"])
    slab = slab.at[r_w2:r_w2 + HIDDEN, :HIDDEN].set(params["w2"])
    slab = slab.at[r_w3:r_w3 + HIDDEN, :action_size].set(params["w3"])
    slab = slab.at[r_b, :HIDDEN].set(params["b1"].reshape(-1))
    slab = slab.at[r_b + 1, :HIDDEN].set(params["b2"].reshape(-1))
    slab = slab.at[r_b + 2, :action_size].set(params["b3"].reshape(-1))
    return slab.astype(dtype)


def qnetwork_forward(state, packed_params, action_size):
    """state: (B, state_size) f32. packed_params: slab from pack_params."""
    B, S = state.shape
    s_pad = _round_up(S, SUB)
    r_w2 = s_pad
    r_w3 = r_w2 + LANE
    r_b = r_w3 + LANE

    # Batch tile: single tile for tiny batches; otherwise split so the grid has
    # >= 2 steps (both v7x TensorCores get work), capped at 1024 rows.
    if B <= SUB:
        TB = _round_up(B, SUB)
    else:
        TB = min(1024, _round_up(pl.cdiv(B, 2), SUB))
    grid = (pl.cdiv(B, TB),)

    kernel = functools.partial(
        qnetwork_kernel, S=S, r_w2=r_w2, r_w3=r_w3, r_b=r_b
    )

    flops = 2 * B * (S * HIDDEN + HIDDEN * HIDDEN + HIDDEN * action_size)
    bytes_accessed = (
        state.size * state.dtype.itemsize
        + packed_params.size * packed_params.dtype.itemsize
        + B * LANE * 4
    )
    cost = pl.CostEstimate(
        flops=flops, transcendentals=0, bytes_accessed=bytes_accessed
    )

    def _run(param_spec):
        return pl.pallas_call(
            kernel,
            out_shape=jax.ShapeDtypeStruct((B, LANE), jnp.float32),
            grid=grid,
            in_specs=[
                pl.BlockSpec((TB, S), lambda i: (i, 0)),   # state tiles (pipelined)
                param_spec,                                 # params slab (resident)
            ],
            out_specs=pl.BlockSpec((TB, LANE), lambda i: (i, 0)),  # lane-dense
            compiler_params=pltpu.CompilerParams(
                dimension_semantics=("parallel",),
            ),
            cost_estimate=cost,
        )(state, packed_params)

    try:
        # Constant block index -> single buffer is enough; saves one ~139 KB
        # VMEM copy and pipeline bookkeeping.
        out = _run(pl.BlockSpec(packed_params.shape, lambda i: (0, 0),
                                pipeline_mode=pl.Buffered(1)))
    except Exception:
        # Fallback if single-buffered pipeline_mode is unsupported on this JAX.
        out = _run(pl.BlockSpec(packed_params.shape, lambda i: (0, 0)))

    return out[:, :action_size]


def init_params(key, state_size, action_size):
    """Deterministic init mimicking torch.nn.Linear default (U[-1/sqrt(fan_in), +])."""
    def linear(key, fan_in, fan_out):
        kw, kb = jax.random.split(key)
        bound = 1.0 / jnp.sqrt(jnp.float32(fan_in))
        # Stored as (in_features, out_features) == torch weight transposed.
        w = jax.random.uniform(kw, (fan_in, fan_out), jnp.float32, -bound, bound)
        b = jax.random.uniform(kb, (1, fan_out), jnp.float32, -bound, bound)
        return w, b

    k1, k2, k3 = jax.random.split(key, 3)
    w1, b1 = linear(k1, state_size, HIDDEN)
    w2, b2 = linear(k2, HIDDEN, HIDDEN)
    w3, b3 = linear(k3, HIDDEN, action_size)
    return {"w1": w1, "b1": b1, "w2": w2, "b2": b2, "w3": w3, "b3": b3}


def reference_forward(state, params):
    h1 = jnp.maximum(state @ params["w1"] + params["b1"], 0.0)
    h2 = jnp.maximum(h1 @ params["w2"] + params["b2"], 0.0)
    return h2 @ params["w3"] + params["b3"]


if __name__ == "__main__":
    key = jax.random.PRNGKey(0)
    k_params, k_state, k_state2 = jax.random.split(key, 3)

    state_size = 4
    action_size = 2

    params = init_params(k_params, state_size, action_size)
    packed_f32 = pack_params(params, state_size, action_size)   # pack once, reuse

    # Case 1: tiny batch (B=2), single grid step.
    state = jax.random.normal(k_state, (2, state_size), jnp.float32)
    out = qnetwork_forward(state, packed_f32, action_size)
    jax.block_until_ready(out)
    ref = reference_forward(state, params)
    assert out.shape == (2, action_size)
    assert jnp.allclose(out, ref, atol=1e-5, rtol=1e-5)

    # Case 2: non-multiple-of-8 batch -> 2 grid steps, partial last tile.
    state2 = jax.random.normal(k_state2, (10, state_size), jnp.float32)
    out2 = qnetwork_forward(state2, packed_f32, action_size)
    jax.block_until_ready(out2)
    ref2 = reference_forward(state2, params)
    assert out2.shape == (10, action_size)
    assert jnp.allclose(out2, ref2, atol=1e-5, rtol=1e-5)

    # Case 3: bf16 parameter slab (v6e/v7x native MXU path), f32 accumulation.
    packed_bf16 = pack_params(params, state_size, action_size, dtype=jnp.bfloat16)
    out3 = qnetwork_forward(state2, packed_bf16, action_size)
    jax.block_until_ready(out3)
    assert out3.shape == (10, action_size)
    assert jnp.allclose(out3, ref2, atol=1e-1, rtol=1e-1)

    print("KERNEL_OK")
</pallas_src>

<mosaic_0001>
module attributes {stable_mosaic.version = 11 : i64} {
  func.func @qnetwork_kernel(%arg0: i32, %arg1: memref<8x4xf32, #tpu.memory_space<vmem>>, %arg2: memref<272x128xf32, #tpu.memory_space<vmem>>, %arg3: memref<8x128xf32, #tpu.memory_space<vmem>>) attributes {dimension_semantics = [#tpu.dimension_semantics<parallel>], iteration_bounds = array<i64: 1>, scalar_prefetch = 0 : i64, scratch_operands = 0 : i64, tpu.core_type = #tpu.core_type<tc>, window_params = [{transform_indices = @transform_0, window_bounds = array<i64: 8, 4>}, {pipeline_mode = #tpu.pipeline_mode<synchronous>, transform_indices = @transform_1, window_bounds = array<i64: 272, 128>}, {transform_indices = @transform_2, window_bounds = array<i64: 8, 128>}]} {
    %c0 = arith.constant 0 : index
    %c0_0 = arith.constant 0 : index
    %0 = vector.load %arg1[%c0, %c0_0] : memref<8x4xf32, #tpu.memory_space<vmem>>, vector<8x4xf32>
    %c0_1 = arith.constant 0 : index
    %c0_2 = arith.constant 0 : index
    %1 = vector.load %arg2[%c0_1, %c0_2] : memref<272x128xf32, #tpu.memory_space<vmem>>, vector<4x128xf32>
    %c8 = arith.constant 8 : index
    %c0_3 = arith.constant 0 : index
    %2 = vector.load %arg2[%c8, %c0_3] : memref<272x128xf32, #tpu.memory_space<vmem>>, vector<128x128xf32>
    %c136 = arith.constant 136 : index
    %c0_4 = arith.constant 0 : index
    %3 = vector.load %arg2[%c136, %c0_4] : memref<272x128xf32, #tpu.memory_space<vmem>>, vector<128x128xf32>
    %c264 = arith.constant 264 : index
    %c0_5 = arith.constant 0 : index
    %4 = vector.load %arg2[%c264, %c0_5] : memref<272x128xf32, #tpu.memory_space<vmem>>, vector<1x128xf32>
    %c265 = arith.constant 265 : index
    %c0_6 = arith.constant 0 : index
    %5 = vector.load %arg2[%c265, %c0_6] : memref<272x128xf32, #tpu.memory_space<vmem>>, vector<1x128xf32>
    %c266 = arith.constant 266 : index
    %c0_7 = arith.constant 0 : index
    %6 = vector.load %arg2[%c266, %c0_7] : memref<272x128xf32, #tpu.memory_space<vmem>>, vector<1x128xf32>
    %cst = arith.constant dense<0.000000e+00> : vector<8x128xf32>
    %7 = tpu.matmul %0, %1, %cst {dimension_numbers = #tpu.dot_dimension_numbers<[1], [0], [0], [1], [0, 0, 1, 1], [], []>} : vector<8x4xf32>, vector<4x128xf32>, vector<8x128xf32> -> vector<8x128xf32>
    %8 = vector.broadcast %4 : vector<1x128xf32> to vector<8x128xf32>
    %9 = arith.addf %7, %8 : vector<8x128xf32>
    %cst_8 = arith.constant 0.000000e+00 : f32
    %10 = vector.broadcast %cst_8 : f32 to vector<8x128xf32>
    %11 = arith.maximumf %9, %10 : vector<8x128xf32>
    %cst_9 = arith.constant dense<0.000000e+00> : vector<8x128xf32>
    %12 = tpu.matmul %11, %2, %cst_9 {dimension_numbers = #tpu.dot_dimension_numbers<[1], [0], [0], [1], [0, 0, 1, 1], [], []>} : vector<8x128xf32>, vector<128x128xf32>, vector<8x128xf32> -> vector<8x128xf32>
    %13 = vector.broadcast %5 : vector<1x128xf32> to vector<8x128xf32>
    %14 = arith.addf %12, %13 : vector<8x128xf32>
    %cst_10 = arith.constant 0.000000e+00 : f32
    %15 = vector.broadcast %cst_10 : f32 to vector<8x128xf32>
    %16 = arith.maximumf %14, %15 : vector<8x128xf32>
    %cst_11 = arith.constant dense<0.000000e+00> : vector<8x128xf32>
    %17 = tpu.matmul %16, %3, %cst_11 {dimension_numbers = #tpu.dot_dimension_numbers<[1], [0], [0], [1], [0, 0, 1, 1], [], []>} : vector<8x128xf32>, vector<128x128xf32>, vector<8x128xf32> -> vector<8x128xf32>
    %18 = vector.broadcast %6 : vector<1x128xf32> to vector<8x128xf32>
    %19 = arith.addf %17, %18 : vector<8x128xf32>
    %c0_12 = arith.constant 0 : index
    %c0_13 = arith.constant 0 : index
    %20 = vector.load %arg3[%c0_12, %c0_13] : memref<8x128xf32, #tpu.memory_space<vmem>>, vector<8x128xf32>
    tpu.vector_store %arg3[%c0_12, %c0_13], %19 {strides = array<i32>} : memref<8x128xf32, #tpu.memory_space<vmem>>, vector<8x128xf32>,
    return
  }
  func.func @transform_0(%arg0: i32) -> (i32, i32) {
    %c0_i32 = arith.constant 0 : i32
    %c0_i32_0 = arith.constant 0 : i32
    return %arg0, %c0_i32 : i32, i32
  }
  func.func @transform_1(%arg0: i32) -> (i32, i32) {
    %c0_i32 = arith.constant 0 : i32
    %c0_i32_0 = arith.constant 0 : i32
    %c0_i32_1 = arith.constant 0 : i32
    return %c0_i32, %c0_i32_0 : i32, i32
  }
  func.func @transform_2(%arg0: i32) -> (i32, i32) {
    %c0_i32 = arith.constant 0 : i32
    %c0_i32_0 = arith.constant 0 : i32
    return %arg0, %c0_i32 : i32, i32
  }
}

module attributes {stable_mosaic.version = 11 : i64} {
  func.func @qnetwork_kernel(%arg0: i32, %arg1: memref<8x4xf32, #tpu.memory_space<vmem>>, %arg2: memref<272x128xf32, #tpu.memory_space<vmem>>, %arg3: memref<8x128xf32, #tpu.memory_space<vmem>>) attributes {dimension_semantics = [#tpu.dimension_semantics<parallel>], iteration_bounds = array<i64: 1>, scalar_prefetch = 0 : i64, scratch_operands = 0 : i64, tpu.core_type = #tpu.core_type<tc>, window_params = [{transform_indices = @transform_0, window_bounds = array<i64: 8, 4>}, {pipeline_mode = #tpu.pipeline_mode<synchronous>, transform_indices = @transform_1, window_bounds = array<i64: 272, 128>}, {transform_indices = @transform_2, window_bounds = array<i64: 8, 128>}]} {
    %c0 = arith.constant 0 : index
    %c0_0 = arith.constant 0 : index
    %0 = vector.load %arg1[%c0, %c0_0] : memref<8x4xf32, #tpu.memory_space<vmem>>, vector<8x4xf32>
    %c0_1 = arith.constant 0 : index
    %c0_2 = arith.constant 0 : index
    %1 = vector.load %arg2[%c0_1, %c0_2] : memref<272x128xf32, #tpu.memory_space<vmem>>, vector<4x128xf32>
    %c8 = arith.constant 8 : index
    %c0_3 = arith.constant 0 : index
    %2 = vector.load %arg2[%c8, %c0_3] : memref<272x128xf32, #tpu.memory_space<vmem>>, vector<128x128xf32>
    %c136 = arith.constant 136 : index
    %c0_4 = arith.constant 0 : index
    %3 = vector.load %arg2[%c136, %c0_4] : memref<272x128xf32, #tpu.memory_space<vmem>>, vector<128x128xf32>
    %c264 = arith.constant 264 : index
    %c0_5 = arith.constant 0 : index
    %4 = vector.load %arg2[%c264, %c0_5] : memref<272x128xf32, #tpu.memory_space<vmem>>, vector<1x128xf32>
    %c265 = arith.constant 265 : index
    %c0_6 = arith.constant 0 : index
    %5 = vector.load %arg2[%c265, %c0_6] : memref<272x128xf32, #tpu.memory_space<vmem>>, vector<1x128xf32>
    %c266 = arith.constant 266 : index
    %c0_7 = arith.constant 0 : index
    %6 = vector.load %arg2[%c266, %c0_7] : memref<272x128xf32, #tpu.memory_space<vmem>>, vector<1x128xf32>
    %cst = arith.constant dense<0.000000e+00> : vector<8x128xf32>
    %7 = tpu.matmul %0, %1, %cst {dimension_numbers = #tpu.dot_dimension_numbers<[1], [0], [0], [1], [0, 0, 1, 1], [], []>} : vector<8x4xf32>, vector<4x128xf32>, vector<8x128xf32> -> vector<8x128xf32>
    %8 = vector.broadcast %4 : vector<1x128xf32> to vector<8x128xf32>
    %9 = arith.addf %7, %8 : vector<8x128xf32>
    %cst_8 = arith.constant 0.000000e+00 : f32
    %10 = vector.broadcast %cst_8 : f32 to vector<8x128xf32>
    %11 = arith.maximumf %9, %10 : vector<8x128xf32>
    %cst_9 = arith.constant dense<0.000000e+00> : vector<8x128xf32>
    %12 = tpu.matmul %11, %2, %cst_9 {dimension_numbers = #tpu.dot_dimension_numbers<[1], [0], [0], [1], [0, 0, 1, 1], [], []>} : vector<8x128xf32>, vector<128x128xf32>, vector<8x128xf32> -> vector<8x128xf32>
    %13 = vector.broadcast %5 : vector<1x128xf32> to vector<8x128xf32>
    %14 = arith.addf %12, %13 : vector<8x128xf32>
    %cst_10 = arith.constant 0.000000e+00 : f32
    %15 = vector.broadcast %cst_10 : f32 to vector<8x128xf32>
    %16 = arith.maximumf %14, %15 : vector<8x128xf32>
    %cst_11 = arith.constant dense<0.000000e+00> : vector<8x128xf32>
    %17 = tpu.matmul %16, %3, %cst_11 {dimension_numbers = #tpu.dot_dimension_numbers<[1], [0], [0], [1], [0, 0, 1, 1], [], []>} : vector<8x128xf32>, vector<128x128xf32>, vector<8x128xf32> -> vector<8x128xf32>
    %18 = vector.broadcast %6 : vector<1x128xf32> to vector<8x128xf32>
    %19 = arith.addf %17, %18 : vector<8x128xf32>
    %c0_12 = arith.constant 0 : index
    %c0_13 = arith.constant 0 : index
    %20 = vector.load %arg3[%c0_12, %c0_13] : memref<8x128xf32, #tpu.memory_space<vmem>>, vector<8x128xf32>
    tpu.vector_store %arg3[%c0_12, %c0_13], %19 {strides = array<i32>} : memref<8x128xf32, #tpu.memory_space<vmem>>, vector<8x128xf32>,
    return
  }
  func.func @transform_0(%arg0: i32) -> (i32, i32) {
    %c0_i32 = arith.constant 0 : i32
    %c0_i32_0 = arith.constant 0 : i32
    return %arg0, %c0_i32 : i32, i32
  }
  func.func @transform_1(%arg0: i32) -> (i32, i32) {
    %c0_i32 = arith.constant 0 : i32
    %c0_i32_0 = arith.constant 0 : i32
    %c0_i32_1 = arith.constant 0 : i32
    return %c0_i32, %c0_i32_0 : i32, i32
  }
  func.func @transform_2(%arg0: i32) -> (i32, i32) {
    %c0_i32 = arith.constant 0 : i32
    %c0_i32_0 = arith.constant 0 : i32
    return %arg0, %c0_i32 : i32, i32
  }
}

</mosaic_0001>

<llo_original>
// kernel: tpu_custom_call.1
$region0: #{tpu_custom_call.1}
  #allocation0 [shape = 'u32[]', space=smem, size = 0x4, offset = 0x4, fixed_abs, tag = 'smem constant byte address 0x4 - core index']
  #allocation1 [shape = 'u32[144,128]{1,0:T(1,128)}', space=vmem, size = 0x12000, scoped, tag = 'internal scratch']
  %s0 = inlined_call_operand.hbm [shape: f32[2,4], index: 0, kind: input, shape index: {}]
  %s1 = inlined_call_operand.hbm [shape: f32[272,128], index: 1, kind: input, shape index: {}]
  %s2 = inlined_call_operand.hbm [shape: f32[2,128], index: 2, kind: output, shape index: {}]
  %s3 = sld [smem:[#allocation0]]
  $region26: #{tpu_custom_call.1} parent=0
    _
  %s5 = ssub.s32 1, %s3
  %s6 = scalar_select 0, %s5, %s3
  $region1: #{tpu_custom_call.1} parent=0
    #allocation2 [shape = 'u8[4096]{0}', space=vmem, size = 0x1000, scoped, tag = 'input window, operand 0, single buffered']
    #allocation3 [shape = 's32[1]{0}', space=sflag, size = 0x4, scoped, tag = 'scoped memory for tpu_custom_call.1']
    #allocation4 [shape = 's32[1]{0}', space=sflag, size = 0x4, scoped, tag = 'scoped memory for tpu_custom_call.1']
    #allocation5 [shape = 'u8[139264]{0}', space=vmem, size = 0x22000, scoped, tag = 'input window, operand 1, single buffered']
    #allocation6 [shape = 's32[1]{0}', space=sflag, size = 0x4, scoped, tag = 'scoped memory for tpu_custom_call.1']
    #allocation7 [shape = 'u8[4096]{0}', space=vmem, size = 0x1000, scoped, tag = 'output window, operand 0, single buffered']
    %7 = vsyncpa [#allocation3], 0
    %8 = vsyncpa [#allocation6], 0
    %9 = vsyncpa [#allocation4], 0
    // Predicated region
    $region2: #{tpu_custom_call.1} parent=1 // pred_check
      _
    $region3: #{tpu_custom_call.1} parent=1 // pred_check_branch
      %11 = sbr.rel (0) target = $region5
    $region4: #{tpu_custom_call.1} parent=1 // pred_region
      %s13 = ssub.s32 128, 32
      %14 = vsyncadd [#allocation3], %s13
      %s15 = sshll.u32 [#allocation2], 4
      %s16 = int_to_ptr.vmem [resolvable:$true] %s15
      %21 = dma.hbm_to_vmem [thread:$0]  %s0, 32, %s16, [#allocation3], 32, 32, 2
    $region5: #{tpu_custom_call.1} parent=1 // pred_fallthru
      _
    // Predicated region
    $region6: #{tpu_custom_call.1} parent=1 // pred_check
      _
    $region7: #{tpu_custom_call.1} parent=1 // pred_check_branch
      %23 = sbr.rel (0) target = $region9
    $region8: #{tpu_custom_call.1} parent=1 // pred_region
      %s25 = ssub.s32 4352, 4352
      %26 = vsyncadd [#allocation6], %s25
      %s27 = sshll.u32 [#allocation5], 4
      %s28 = int_to_ptr.vmem [resolvable:$true] %s27
      %33 = dma.hbm_to_vmem [thread:$0]  %s1, 4352, %s28, [#allocation6], 128, 128, 8
    $region9: #{tpu_custom_call.1} parent=1 // pred_fallthru
      _
    // Predicated region
    $region10: #{tpu_custom_call.1} parent=1 // pred_check
      _
    $region11: #{tpu_custom_call.1} parent=1 // pred_check_branch
      %35 = sbr.rel (0) target = $region13
    $region12: #{tpu_custom_call.1} parent=1 // pred_region
      %36 = dma.done [#allocation3], 128
    $region13: #{tpu_custom_call.1} parent=1 // pred_fallthru
      _
    // Predicated region
    $region14: #{tpu_custom_call.1} parent=1 // pred_check
      _
    $region15: #{tpu_custom_call.1} parent=1 // pred_check_branch
      %38 = sbr.rel (0) target = $region17
    $region16: #{tpu_custom_call.1} parent=1 // pred_region
      %39 = dma.done [#allocation6], 4352
    $region17: #{tpu_custom_call.1} parent=1 // pred_fallthru
      _
    %v40 = vld [vmem:[#allocation2] sm:$0xff]
    %v41 = vld [vmem:[#allocation5] sm:$0xf]
    %v42 = vld [vmem:[#allocation5 + $0x8] sm:$0xff]
    %v43 = vld [vmem:[#allocation5 + $0x10] sm:$0xff]
    %v44 = vld [vmem:[#allocation5 + $0x18] sm:$0xff]
    %v45 = vld [vmem:[#allocation5 + $0x20] sm:$0xff]
    %v46 = vld [vmem:[#allocation5 + $0x28] sm:$0xff]
    %v47 = vld [vmem:[#allocation5 + $0x30] sm:$0xff]
    %v48 = vld [vmem:[#allocation5 + $0x38] sm:$0xff]
    %v49 = vld [vmem:[#allocation5 + $0x40] sm:$0xff]
    %v50 = vld [vmem:[#allocation5 + $0x48] sm:$0xff]
    %v51 = vld [vmem:[#allocation5 + $0x50] sm:$0xff]
    %v52 = vld [vmem:[#allocation5 + $0x58] sm:$0xff]
    %v53 = vld [vmem:[#allocation5 + $0x60] sm:$0xff]
    %v54 = vld [vmem:[#allocation5 + $0x68] sm:$0xff]
    %v55 = vld [vmem:[#allocation5 + $0x70] sm:$0xff]
    %v56 = vld [vmem:[#allocation5 + $0x78] sm:$0xff]
    %v57 = vld [vmem:[#allocation5 + $0x80] sm:$0xff]
    %v58 = vld [vmem:[#allocation5 + $0x88] sm:$0xff]
    %v59 = vld [vmem:[#allocation5 + $0x90] sm:$0xff]
    %v60 = vld [vmem:[#allocation5 + $0x98] sm:$0xff]
    %v61 = vld [vmem:[#allocation5 + $0xa0] sm:$0xff]
    %v62 = vld [vmem:[#allocation5 + $0xa8] sm:$0xff]
    %v63 = vld [vmem:[#allocation5 + $0xb0] sm:$0xff]
    %v64 = vld [vmem:[#allocation5 + $0xb8] sm:$0xff]
    %v65 = vld [vmem:[#allocation5 + $0xc0] sm:$0xff]
    %v66 = vld [vmem:[#allocation5 + $0xc8] sm:$0xff]
    %v67 = vld [vmem:[#allocation5 + $0xd0] sm:$0xff]
    %v68 = vld [vmem:[#allocation5 + $0xd8] sm:$0xff]
    %v69 = vld [vmem:[#allocation5 + $0xe0] sm:$0xff]
    %v70 = vld [vmem:[#allocation5 + $0xe8] sm:$0xff]
    %v71 = vld [vmem:[#allocation5 + $0xf0] sm:$0xff]
    %v72 = vld [vmem:[#allocation5 + $0xf8] sm:$0xff]
    %v73 = vld [vmem:[#allocation5 + $0x100] sm:$0xff]
    %v74 = vld [vmem:[#allocation5 + $0x108] sm:$0x1]
    %v75 = vld [vmem:[#allocation5 + $0x109] sm:$0x1]
    %v76 = vld [vmem:[#allocation5 + $0x10a] sm:$0x1]
    %v77 = vlaneseq
    %v78 = vshrl.u32 %v77, 7
    %v79 = vsub.s32 0, %v78
    %v80 = vrot.slane %v74, %v79
    %vm81 = vcmask 31744
    %v83 = vsel %vm81, %v40, 0
    %vm85 = vcmask 1043456
    %v87 = vsel %vm85, %v41, 0
    %89 = vmatprep.subr.mxu0 0.0
    %90 = vmatpush1.msra.mxu0 %v87
    %91 = vmatprep.subr.mxu0 0.0
    %92 = vmatpush1.msra.mxu0 0.0
    %93 = vmatprep.subr.mxu0 0.0
    %94 = vmatpush1.msra.mxu0 0.0
    %95 = vmatprep.subr.mxu0 0.0
    %96 = vmatpush1.msra.mxu0 0.0
    %97 = vmatprep.subr.mxu0 0.0
    %98 = vmatpush1.msra.mxu0 0.0
    %99 = vmatprep.subr.mxu0 0.0
    %100 = vmatpush1.msra.mxu0 0.0
    %101 = vmatprep.subr.mxu0 0.0
    %102 = vmatpush1.msra.mxu0 0.0
    %103 = vmatprep.subr.mxu0 0.0
    %104 = vmatpush1.msra.mxu0 0.0
    %105 = vmatprep.subr.mxu0 0.0
    %106 = vmatpush1.msra.mxu0 0.0
    %107 = vmatprep.subr.mxu0 0.0
    %108 = vmatpush1.msra.mxu0 0.0
    %109 = vmatprep.subr.mxu0 0.0
    %110 = vmatpush1.msra.mxu0 0.0
    %111 = vmatprep.subr.mxu0 0.0
    %112 = vmatpush1.msra.mxu0 0.0
    %113 = vmatprep.subr.mxu0 0.0
    %114 = vmatpush1.msra.mxu0 0.0
    %115 = vmatprep.subr.mxu0 0.0
    %116 = vmatpush1.msra.mxu0 0.0
    %117 = vmatprep.subr.mxu0 0.0
    %118 = vmatpush1.msra.mxu0 0.0
    %119 = vmatprep.subr.mxu0 0.0
    %120 = vmatpush1.msra.mxu0 0.0
    %121 = vmatprep.subr.mxu0 0.0
    %122 = vmatpush1.msra.mxu0 0.0
    %123 = vmatprep.subr.mxu0 0.0
    %124 = vmatpush1.msra.mxu0 0.0
    %125 = vmatprep.subr.mxu0 0.0
    %126 = vmatpush1.msra.mxu0 0.0
    %127 = vmatprep.subr.mxu0 0.0
    %128 = vmatpush1.msra.mxu0 0.0
    %129 = vmatprep.subr.mxu0 0.0
    %130 = vmatpush1.msra.mxu0 0.0
    %131 = vmatprep.subr.mxu0 0.0
    %132 = vmatpush1.msra.mxu0 0.0
    %133 = vmatprep.subr.mxu0 0.0
    %134 = vmatpush1.msra.mxu0 0.0
    %135 = vmatprep.subr.mxu0 0.0
    %136 = vmatpush1.msra.mxu0 0.0
    %137 = vmatprep.subr.mxu0 0.0
    %138 = vmatpush1.msra.mxu0 0.0
    %139 = vmatprep.subr.mxu0 0.0
    %140 = vmatpush1.msra.mxu0 0.0
    %141 = vmatprep.subr.mxu0 0.0
    %142 = vmatpush1.msra.mxu0 0.0
    %143 = vmatprep.subr.mxu0 0.0
    %144 = vmatpush1.msra.mxu0 0.0
    %145 = vmatprep.subr.mxu0 0.0
    %146 = vmatpush1.msra.mxu0 0.0
    %147 = vmatprep.subr.mxu0 0.0
    %148 = vmatpush1.msra.mxu0 0.0
    %149 = vmatprep.subr.mxu0 0.0
    %150 = vmatpush1.msra.mxu0 0.0
    %151 = vmatprep.subr.mxu0 0.0
    %152 = vmatpush1.msra.mxu0 0.0
    %153 = vmatprep.mubr.f32.mxu0 0.0
    %154 = vmatmul.mubr.f32.gmra.mrb[0].mxu0 %v83
    %v155 = vpop.f32.mrb[0].mxu0
    %v156 = vadd.f32 %v80, %v155
    %v157 = vpop.f32.mrb[0].mxu0
    %158 = vdwg.mxu0
    %v159 = vmax.f32 %v156, 0.0
    %v160 = vlaneseq
    %v161 = vshrl.u32 %v160, 7
    %v162 = vsub.s32 0, %v161
    %v163 = vrot.slane %v75, %v162
    %164 = vmatprep.subr.mxu0 0.0
    %165 = vmatpush1.msra.mxu0 %v42
    %166 = vmatprep.subr.mxu0 0.0
    %167 = vmatpush1.msra.mxu0 %v43
    %168 = vmatprep.subr.mxu0 0.0
    %169 = vmatpush1.msra.mxu0 %v44
    %170 = vmatprep.subr.mxu0 0.0
    %171 = vmatpush1.msra.mxu0 %v45
    %172 = vmatprep.subr.mxu0 0.0
    %173 = vmatpush1.msra.mxu0 %v46
    %174 = vmatprep.subr.mxu0 0.0
    %175 = vmatpush1.msra.mxu0 %v47
    %176 = vmatprep.subr.mxu0 0.0
    %177 = vmatpush1.msra.mxu0 %v48
    %178 = vmatprep.subr.mxu0 0.0
    %179 = vmatpush1.msra.mxu0 %v49
    %180 = vmatprep.subr.mxu0 0.0
    %181 = vmatpush1.msra.mxu0 %v50
    %182 = vmatprep.subr.mxu0 0.0
    %183 = vmatpush1.msra.mxu0 %v51
    %184 = vmatprep.subr.mxu0 0.0
    %185 = vmatpush1.msra.mxu0 %v52
    %186 = vmatprep.subr.mxu0 0.0
    %187 = vmatpush1.msra.mxu0 %v53
    %188 = vmatprep.subr.mxu0 0.0
    %189 = vmatpush1.msra.mxu0 %v54
    %190 = vmatprep.subr.mxu0 0.0
    %191 = vmatpush1.msra.mxu0 %v55
    %192 = vmatprep.subr.mxu0 0.0
    %193 = vmatpush1.msra.mxu0 %v56
    %194 = vmatprep.subr.mxu0 0.0
    %195 = vmatpush1.msra.mxu0 %v57
    %196 = vmatprep.subr.mxu0 0.0
    %197 = vmatpush1.msra.mxu0 0.0
    %198 = vmatprep.subr.mxu0 0.0
    %199 = vmatpush1.msra.mxu0 0.0
    %200 = vmatprep.subr.mxu0 0.0
    %201 = vmatpush1.msra.mxu0 0.0
    %202 = vmatprep.subr.mxu0 0.0
    %203 = vmatpush1.msra.mxu0 0.0
    %204 = vmatprep.subr.mxu0 0.0
    %205 = vmatpush1.msra.mxu0 0.0
    %206 = vmatprep.subr.mxu0 0.0
    %207 = vmatpush1.msra.mxu0 0.0
    %208 = vmatprep.subr.mxu0 0.0
    %209 = vmatpush1.msra.mxu0 0.0
    %210 = vmatprep.subr.mxu0 0.0
    %211 = vmatpush1.msra.mxu0 0.0
    %212 = vmatprep.subr.mxu0 0.0
    %213 = vmatpush1.msra.mxu0 0.0
    %214 = vmatprep.subr.mxu0 0.0
    %215 = vmatpush1.msra.mxu0 0.0
    %216 = vmatprep.subr.mxu0 0.0
    %217 = vmatpush1.msra.mxu0 0.0
    %218 = vmatprep.subr.mxu0 0.0
    %219 = vmatpush1.msra.mxu0 0.0
    %220 = vmatprep.subr.mxu0 0.0
    %221 = vmatpush1.msra.mxu0 0.0
    %222 = vmatprep.subr.mxu0 0.0
    %223 = vmatpush1.msra.mxu0 0.0
    %224 = vmatprep.subr.mxu0 0.0
    %225 = vmatpush1.msra.mxu0 0.0
    %226 = vmatprep.subr.mxu0 0.0
    %227 = vmatpush1.msra.mxu0 0.0
    %228 = vmatprep.mubr.f32.mxu0 0.0
    %229 = vmatmul.mubr.f32.gmra.mrb[0].mxu0 %v159
    %v230 = vpop.f32.mrb[0].mxu0
    %v231 = vadd.f32 %v163, %v230
    %v232 = vpop.f32.mrb[0].mxu0
    %233 = vdwg.mxu0
    %v234 = vmax.f32 %v231, 0.0
    %v235 = vlaneseq
    %v236 = vshrl.u32 %v235, 7
    %v237 = vsub.s32 0, %v236
    %v238 = vrot.slane %v76, %v237
    %239 = vmatprep.subr.mxu0 0.0
    %240 = vmatpush1.msra.mxu0 %v58
    %241 = vmatprep.subr.mxu0 0.0
    %242 = vmatpush1.msra.mxu0 %v59
    %243 = vmatprep.subr.mxu0 0.0
    %244 = vmatpush1.msra.mxu0 %v60
    %245 = vmatprep.subr.mxu0 0.0
    %246 = vmatpush1.msra.mxu0 %v61
    %247 = vmatprep.subr.mxu0 0.0
    %248 = vmatpush1.msra.mxu0 %v62
    %249 = vmatprep.subr.mxu0 0.0
    %250 = vmatpush1.msra.mxu0 %v63
    %251 = vmatprep.subr.mxu0 0.0
    %252 = vmatpush1.msra.mxu0 %v64
    %253 = vmatprep.subr.mxu0 0.0
    %254 = vmatpush1.msra.mxu0 %v65
    %255 = vmatprep.subr.mxu0 0.0
    %256 = vmatpush1.msra.mxu0 %v66
    %257 = vmatprep.subr.mxu0 0.0
    %258 = vmatpush1.msra.mxu0 %v67
    %259 = vmatprep.subr.mxu0 0.0
    %260 = vmatpush1.msra.mxu0 %v68
    %261 = vmatprep.subr.mxu0 0.0
    %262 = vmatpush1.msra.mxu0 %v69
    %263 = vmatprep.subr.mxu0 0.0
    %264 = vmatpush1.msra.mxu0 %v70
    %265 = vmatprep.subr.mxu0 0.0
    %266 = vmatpush1.msra.mxu0 %v71
    %267 = vmatprep.subr.mxu0 0.0
    %268 = vmatpush1.msra.mxu0 %v72
    %269 = vmatprep.subr.mxu0 0.0
    %270 = vmatpush1.msra.mxu0 %v73
    %271 = vmatprep.subr.mxu0 0.0
    %272 = vmatpush1.msra.mxu0 0.0
    %273 = vmatprep.subr.mxu0 0.0
    %274 = vmatpush1.msra.mxu0 0.0
    %275 = vmatprep.subr.mxu0 0.0
    %276 = vmatpush1.msra.mxu0 0.0
    %277 = vmatprep.subr.mxu0 0.0
    %278 = vmatpush1.msra.mxu0 0.0
    %279 = vmatprep.subr.mxu0 0.0
    %280 = vmatpush1.msra.mxu0 0.0
    %281 = vmatprep.subr.mxu0 0.0
    %282 = vmatpush1.msra.mxu0 0.0
    %283 = vmatprep.subr.mxu0 0.0
    %284 = vmatpush1.msra.mxu0 0.0
    %285 = vmatprep.subr.mxu0 0.0
    %286 = vmatpush1.msra.mxu0 0.0
    %287 = vmatprep.subr.mxu0 0.0
    %288 = vmatpush1.msra.mxu0 0.0
    %289 = vmatprep.subr.mxu0 0.0
    %290 = vmatpush1.msra.mxu0 0.0
    %291 = vmatprep.subr.mxu0 0.0
    %292 = vmatpush1.msra.mxu0 0.0
    %293 = vmatprep.subr.mxu0 0.0
    %294 = vmatpush1.msra.mxu0 0.0
    %295 = vmatprep.subr.mxu0 0.0
    %296 = vmatpush1.msra.mxu0 0.0
    %297 = vmatprep.subr.mxu0 0.0
    %298 = vmatpush1.msra.mxu0 0.0
    %299 = vmatprep.subr.mxu0 0.0
    %300 = vmatpush1.msra.mxu0 0.0
    %301 = vmatprep.subr.mxu0 0.0
    %302 = vmatpush1.msra.mxu0 0.0
    %303 = vmatprep.mubr.f32.mxu0 0.0
    %304 = vmatmul.mubr.f32.gmra.mrb[0].mxu0 %v234
    %v305 = vpop.f32.mrb[0].mxu0
    %v306 = vadd.f32 %v238, %v305
    %v307 = vpop.f32.mrb[0].mxu0
    %308 = vdwg.mxu0
    %309 = vst [vmem:[#allocation7] sm:$0xff] %v306
    // Predicated region
    $region18: #{tpu_custom_call.1} parent=1 // pred_check
      _
    $region19: #{tpu_custom_call.1} parent=1 // pred_check_branch
      %311 = sbr.rel (0) target = $region21
    $region20: #{tpu_custom_call.1} parent=1 // pred_region
      %s313 = ssub.s32 128, 32
      %314 = vsyncadd [#allocation4], %s313
      %s315 = sshll.u32 [#allocation7], 4
      %s316 = int_to_ptr.vmem [resolvable:$true] %s315
      %321 = dma.vmem_to_hbm [thread:$0]  %s316, 32, %s2, [#allocation4], 32, 32, 2
    $region21: #{tpu_custom_call.1} parent=1 // pred_fallthru
      _
    // Predicated region
    $region22: #{tpu_custom_call.1} parent=1 // pred_check
      _
    $region23: #{tpu_custom_call.1} parent=1 // pred_check_branch
      %323 = sbr.rel (0) target = $region25
    $region24: #{tpu_custom_call.1} parent=1 // pred_region
      %324 = dma.done [#allocation4], 128
    $region25: #{tpu_custom_call.1} parent=1 // pred_fallthru
      _
    %325 = vsyncpa [#allocation3], 1
    %326 = vsyncpa [#allocation6], 1
    %327 = vsyncpa [#allocation4], 1

// kernel: tpu_custom_call.1
$region0: #{tpu_custom_call.1}
  #allocation0 [shape = 'u32[]', space=smem, size = 0x4, offset = 0x4, fixed_abs, tag = 'smem constant byte address 0x4 - core index']
  #allocation1 [shape = 'u32[144,128]{1,0:T(1,128)}', space=vmem, size = 0x12000, scoped, tag = 'internal scratch']
  %s0 = inlined_call_operand.hbm [shape: f32[2,4], index: 0, kind: input, shape index: {}]
  %s1 = inlined_call_operand.hbm [shape: f32[272,128], index: 1, kind: input, shape index: {}]
  %s2 = inlined_call_operand.hbm [shape: f32[2,128], index: 2, kind: output, shape index: {}]
  %s3 = sld [smem:[#allocation0]]
  $region26: #{tpu_custom_call.1} parent=0
    _
  %s5 = ssub.s32 1, %s3
  %s6 = scalar_select 0, %s5, %s3
  $region1: #{tpu_custom_call.1} parent=0
    #allocation2 [shape = 'u8[4096]{0}', space=vmem, size = 0x1000, scoped, tag = 'input window, operand 0, single buffered']
    #allocation3 [shape = 's32[1]{0}', space=sflag, size = 0x4, scoped, tag = 'scoped memory for tpu_custom_call.1']
    #allocation4 [shape = 's32[1]{0}', space=sflag, size = 0x4, scoped, tag = 'scoped memory for tpu_custom_call.1']
    #allocation5 [shape = 'u8[139264]{0}', space=vmem, size = 0x22000, scoped, tag = 'input window, operand 1, single buffered']
    #allocation6 [shape = 's32[1]{0}', space=sflag, size = 0x4, scoped, tag = 'scoped memory for tpu_custom_call.1']
    #allocation7 [shape = 'u8[4096]{0}', space=vmem, size = 0x1000, scoped, tag = 'output window, operand 0, single buffered']
    %7 = vsyncpa [#allocation3], 0
    %8 = vsyncpa [#allocation6], 0
    %9 = vsyncpa [#allocation4], 0
    // Predicated region
    $region2: #{tpu_custom_call.1} parent=1 // pred_check
      _
    $region3: #{tpu_custom_call.1} parent=1 // pred_check_branch
      %11 = sbr.rel (0) target = $region5
    $region4: #{tpu_custom_call.1} parent=1 // pred_region
      %s13 = ssub.s32 128, 32
      %14 = vsyncadd [#allocation3], %s13
      %s15 = sshll.u32 [#allocation2], 4
      %s16 = int_to_ptr.vmem [resolvable:$true] %s15
      %21 = dma.hbm_to_vmem [thread:$0]  %s0, 32, %s16, [#allocation3], 32, 32, 2
    $region5: #{tpu_custom_call.1} parent=1 // pred_fallthru
      _
    // Predicated region
    $region6: #{tpu_custom_call.1} parent=1 // pred_check
      _
    $region7: #{tpu_custom_call.1} parent=1 // pred_check_branch
      %23 = sbr.rel (0) target = $region9
    $region8: #{tpu_custom_call.1} parent=1 // pred_region
      %s25 = ssub.s32 4352, 4352
      %26 = vsyncadd [#allocation6], %s25
      %s27 = sshll.u32 [#allocation5], 4
      %s28 = int_to_ptr.vmem [resolvable:$true] %s27
      %33 = dma.hbm_to_vmem [thread:$0]  %s1, 4352, %s28, [#allocation6], 128, 128, 8
    $region9: #{tpu_custom_call.1} parent=1 // pred_fallthru
      _
    // Predicated region
    $region10: #{tpu_custom_call.1} parent=1 // pred_check
      _
    $region11: #{tpu_custom_call.1} parent=1 // pred_check_branch
      %35 = sbr.rel (0) target = $region13
    $region12: #{tpu_custom_call.1} parent=1 // pred_region
      %36 = dma.done [#allocation3], 128
    $region13: #{tpu_custom_call.1} parent=1 // pred_fallthru
      _
    // Predicated region
    $region14: #{tpu_custom_call.1} parent=1 // pred_check
      _
    $region15: #{tpu_custom_call.1} parent=1 // pred_check_branch
      %38 = sbr.rel (0) target = $region17
    $region16: #{tpu_custom_call.1} parent=1 // pred_region
      %39 = dma.done [#allocation6], 4352
    $region17: #{tpu_custom_call.1} parent=1 // pred_fallthru
      _
    %v40 = vld [vmem:[#allocation2] sm:$0xff]
    %v41 = vld [vmem:[#allocation5] sm:$0xf]
    %v42 = vld [vmem:[#allocation5 + $0x8] sm:$0xff]
    %v43 = vld [vmem:[#allocation5 + $0x10] sm:$0xff]
    %v44 = vld [vmem:[#allocation5 + $0x18] sm:$0xff]
    %v45 = vld [vmem:[#allocation5 + $0x20] sm:$0xff]
    %v46 = vld [vmem:[#allocation5 + $0x28] sm:$0xff]
    %v47 = vld [vmem:[#allocation5 + $0x30] sm:$0xff]
    %v48 = vld [vmem:[#allocation5 + $0x38] sm:$0xff]
    %v49 = vld [vmem:[#allocation5 + $0x40] sm:$0xff]
    %v50 = vld [vmem:[#allocation5 + $0x48] sm:$0xff]
    %v51 = vld [vmem:[#allocation5 + $0x50] sm:$0xff]
    %v52 = vld [vmem:[#allocation5 + $0x58] sm:$0xff]
    %v53 = vld [vmem:[#allocation5 + $0x60] sm:$0xff]
    %v54 = vld [vmem:[#allocation5 + $0x68] sm:$0xff]
    %v55 = vld [vmem:[#allocation5 + $0x70] sm:$0xff]
    %v56 = vld [vmem:[#allocation5 + $0x78] sm:$0xff]
    %v57 = vld [vmem:[#allocation5 + $0x80] sm:$0xff]
    %v58 = vld [vmem:[#allocation5 + $0x88] sm:$0xff]
    %v59 = vld [vmem:[#allocation5 + $0x90] sm:$0xff]
    %v60 = vld [vmem:[#allocation5 + $0x98] sm:$0xff]
    %v61 = vld [vmem:[#allocation5 + $0xa0] sm:$0xff]
    %v62 = vld [vmem:[#allocation5 + $0xa8] sm:$0xff]
    %v63 = vld [vmem:[#allocation5 + $0xb0] sm:$0xff]
    %v64 = vld [vmem:[#allocation5 + $0xb8] sm:$0xff]
    %v65 = vld [vmem:[#allocation5 + $0xc0] sm:$0xff]
    %v66 = vld [vmem:[#allocation5 + $0xc8] sm:$0xff]
    %v67 = vld [vmem:[#allocation5 + $0xd0] sm:$0xff]
    %v68 = vld [vmem:[#allocation5 + $0xd8] sm:$0xff]
    %v69 = vld [vmem:[#allocation5 + $0xe0] sm:$0xff]
    %v70 = vld [vmem:[#allocation5 + $0xe8] sm:$0xff]
    %v71 = vld [vmem:[#allocation5 + $0xf0] sm:$0xff]
    %v72 = vld [vmem:[#allocation5 + $0xf8] sm:$0xff]
    %v73 = vld [vmem:[#allocation5 + $0x100] sm:$0xff]
    %v74 = vld [vmem:[#allocation5 + $0x108] sm:$0x1]
    %v75 = vld [vmem:[#allocation5 + $0x109] sm:$0x1]
    %v76 = vld [vmem:[#allocation5 + $0x10a] sm:$0x1]
    %v77 = vlaneseq
    %v78 = vshrl.u32 %v77, 7
    %v79 = vsub.s32 0, %v78
    %v80 = vrot.slane %v74, %v79
    %vm81 = vcmask 31744
    %v83 = vsel %vm81, %v40, 0
    %vm85 = vcmask 1043456
    %v87 = vsel %vm85, %v41, 0
    %89 = vmatprep.subr.mxu0 0.0
    %90 = vmatpush1.msra.mxu0 %v87
    %91 = vmatprep.subr.mxu0 0.0
    %92 = vmatpush1.msra.mxu0 0.0
    %93 = vmatprep.subr.mxu0 0.0
    %94 = vmatpush1.msra.mxu0 0.0
    %95 = vmatprep.subr.mxu0 0.0
    %96 = vmatpush1.msra.mxu0 0.0
    %97 = vmatprep.subr.mxu0 0.0
    %98 = vmatpush1.msra.mxu0 0.0
    %99 = vmatprep.subr.mxu0 0.0
    %100 = vmatpush1.msra.mxu0 0.0
    %101 = vmatprep.subr.mxu0 0.0
    %102 = vmatpush1.msra.mxu0 0.0
    %103 = vmatprep.subr.mxu0 0.0
    %104 = vmatpush1.msra.mxu0 0.0
    %105 = vmatprep.subr.mxu0 0.0
    %106 = vmatpush1.msra.mxu0 0.0
    %107 = vmatprep.subr.mxu0 0.0
    %108 = vmatpush1.msra.mxu0 0.0
    %109 = vmatprep.subr.mxu0 0.0
    %110 = vmatpush1.msra.mxu0 0.0
    %111 = vmatprep.subr.mxu0 0.0
    %112 = vmatpush1.msra.mxu0 0.0
    %113 = vmatprep.subr.mxu0 0.0
    %114 = vmatpush1.msra.mxu0 0.0
    %115 = vmatprep.subr.mxu0 0.0
    %116 = vmatpush1.msra.mxu0 0.0
    %117 = vmatprep.subr.mxu0 0.0
    %118 = vmatpush1.msra.mxu0 0.0
    %119 = vmatprep.subr.mxu0 0.0
    %120 = vmatpush1.msra.mxu0 0.0
    %121 = vmatprep.subr.mxu0 0.0
    %122 = vmatpush1.msra.mxu0 0.0
    %123 = vmatprep.subr.mxu0 0.0
    %124 = vmatpush1.msra.mxu0 0.0
    %125 = vmatprep.subr.mxu0 0.0
    %126 = vmatpush1.msra.mxu0 0.0
    %127 = vmatprep.subr.mxu0 0.0
    %128 = vmatpush1.msra.mxu0 0.0
    %129 = vmatprep.subr.mxu0 0.0
    %130 = vmatpush1.msra.mxu0 0.0
    %131 = vmatprep.subr.mxu0 0.0
    %132 = vmatpush1.msra.mxu0 0.0
    %133 = vmatprep.subr.mxu0 0.0
    %134 = vmatpush1.msra.mxu0 0.0
    %135 = vmatprep.subr.mxu0 0.0
    %136 = vmatpush1.msra.mxu0 0.0
    %137 = vmatprep.subr.mxu0 0.0
    %138 = vmatpush1.msra.mxu0 0.0
    %139 = vmatprep.subr.mxu0 0.0
    %140 = vmatpush1.msra.mxu0 0.0
    %141 = vmatprep.subr.mxu0 0.0
    %142 = vmatpush1.msra.mxu0 0.0
    %143 = vmatprep.subr.mxu0 0.0
    %144 = vmatpush1.msra.mxu0 0.0
    %145 = vmatprep.subr.mxu0 0.0
    %146 = vmatpush1.msra.mxu0 0.0
    %147 = vmatprep.subr.mxu0 0.0
    %148 = vmatpush1.msra.mxu0 0.0
    %149 = vmatprep.subr.mxu0 0.0
    %150 = vmatpush1.msra.mxu0 0.0
    %151 = vmatprep.subr.mxu0 0.0
    %152 = vmatpush1.msra.mxu0 0.0
    %153 = vmatprep.mubr.f32.mxu0 0.0
    %154 = vmatmul.mubr.f32.gmra.mrb[0].mxu0 %v83
    %v155 = vpop.f32.mrb[0].mxu0
    %v156 = vadd.f32 %v80, %v155
    %v157 = vpop.f32.mrb[0].mxu0
    %158 = vdwg.mxu0
    %v159 = vmax.f32 %v156, 0.0
    %v160 = vlaneseq
    %v161 = vshrl.u32 %v160, 7
    %v162 = vsub.s32 0, %v161
    %v163 = vrot.slane %v75, %v162
    %164 = vmatprep.subr.mxu0 0.0
    %165 = vmatpush1.msra.mxu0 %v42
    %166 = vmatprep.subr.mxu0 0.0
    %167 = vmatpush1.msra.mxu0 %v43
    %168 = vmatprep.subr.mxu0 0.0
    %169 = vmatpush1.msra.mxu0 %v44
    %170 = vmatprep.subr.mxu0 0.0
    %171 = vmatpush1.msra.mxu0 %v45
    %172 = vmatprep.subr.mxu0 0.0
    %173 = vmatpush1.msra.mxu0 %v46
    %174 = vmatprep.subr.mxu0 0.0
    %175 = vmatpush1.msra.mxu0 %v47
    %176 = vmatprep.subr.mxu0 0.0
    %177 = vmatpush1.msra.mxu0 %v48
    %178 = vmatprep.subr.mxu0 0.0
    %179 = vmatpush1.msra.mxu0 %v49
    %180 = vmatprep.subr.mxu0 0.0
    %181 = vmatpush1.msra.mxu0 %v50
    %182 = vmatprep.subr.mxu0 0.0
    %183 = vmatpush1.msra.mxu0 %v51
    %184 = vmatprep.subr.mxu0 0.0
    %185 = vmatpush1.msra.mxu0 %v52
    %186 = vmatprep.subr.mxu0 0.0
    %187 = vmatpush1.msra.mxu0 %v53
    %188 = vmatprep.subr.mxu0 0.0
    %189 = vmatpush1.msra.mxu0 %v54
    %190 = vmatprep.subr.mxu0 0.0
    %191 = vmatpush1.msra.mxu0 %v55
    %192 = vmatprep.subr.mxu0 0.0
    %193 = vmatpush1.msra.mxu0 %v56
    %194 = vmatprep.subr.mxu0 0.0
    %195 = vmatpush1.msra.mxu0 %v57
    %196 = vmatprep.subr.mxu0 0.0
    %197 = vmatpush1.msra.mxu0 0.0
    %198 = vmatprep.subr.mxu0 0.0
    %199 = vmatpush1.msra.mxu0 0.0
    %200 = vmatprep.subr.mxu0 0.0
    %201 = vmatpush1.msra.mxu0 0.0
    %202 = vmatprep.subr.mxu0 0.0
    %203 = vmatpush1.msra.mxu0 0.0
    %204 = vmatprep.subr.mxu0 0.0
    %205 = vmatpush1.msra.mxu0 0.0
    %206 = vmatprep.subr.mxu0 0.0
    %207 = vmatpush1.msra.mxu0 0.0
    %208 = vmatprep.subr.mxu0 0.0
    %209 = vmatpush1.msra.mxu0 0.0
    %210 = vmatprep.subr.mxu0 0.0
    %211 = vmatpush1.msra.mxu0 0.0
    %212 = vmatprep.subr.mxu0 0.0
    %213 = vmatpush1.msra.mxu0 0.0
    %214 = vmatprep.subr.mxu0 0.0
    %215 = vmatpush1.msra.mxu0 0.0
    %216 = vmatprep.subr.mxu0 0.0
    %217 = vmatpush1.msra.mxu0 0.0
    %218 = vmatprep.subr.mxu0 0.0
    %219 = vmatpush1.msra.mxu0 0.0
    %220 = vmatprep.subr.mxu0 0.0
    %221 = vmatpush1.msra.mxu0 0.0
    %222 = vmatprep.subr.mxu0 0.0
    %223 = vmatpush1.msra.mxu0 0.0
    %224 = vmatprep.subr.mxu0 0.0
    %225 = vmatpush1.msra.mxu0 0.0
    %226 = vmatprep.subr.mxu0 0.0
    %227 = vmatpush1.msra.mxu0 0.0
    %228 = vmatprep.mubr.f32.mxu0 0.0
    %229 = vmatmul.mubr.f32.gmra.mrb[0].mxu0 %v159
    %v230 = vpop.f32.mrb[0].mxu0
    %v231 = vadd.f32 %v163, %v230
    %v232 = vpop.f32.mrb[0].mxu0
    %233 = vdwg.mxu0
    %v234 = vmax.f32 %v231, 0.0
    %v235 = vlaneseq
    %v236 = vshrl.u32 %v235, 7
    %v237 = vsub.s32 0, %v236
    %v238 = vrot.slane %v76, %v237
    %239 = vmatprep.subr.mxu0 0.0
    %240 = vmatpush1.msra.mxu0 %v58
    %241 = vmatprep.subr.mxu0 0.0
    %242 = vmatpush1.msra.mxu0 %v59
    %243 = vmatprep.subr.mxu0 0.0
    %244 = vmatpush1.msra.mxu0 %v60
    %245 = vmatprep.subr.mxu0 0.0
    %246 = vmatpush1.msra.mxu0 %v61
    %247 = vmatprep.subr.mxu0 0.0
    %248 = vmatpush1.msra.mxu0 %v62
    %249 = vmatprep.subr.mxu0 0.0
    %250 = vmatpush1.msra.mxu0 %v63
    %251 = vmatprep.subr.mxu0 0.0
    %252 = vmatpush1.msra.mxu0 %v64
    %253 = vmatprep.subr.mxu0 0.0
    %254 = vmatpush1.msra.mxu0 %v65
    %255 = vmatprep.subr.mxu0 0.0
    %256 = vmatpush1.msra.mxu0 %v66
    %257 = vmatprep.subr.mxu0 0.0
    %258 = vmatpush1.msra.mxu0 %v67
    %259 = vmatprep.subr.mxu0 0.0
    %260 = vmatpush1.msra.mxu0 %v68
    %261 = vmatprep.subr.mxu0 0.0
    %262 = vmatpush1.msra.mxu0 %v69
    %263 = vmatprep.subr.mxu0 0.0
    %264 = vmatpush1.msra.mxu0 %v70
    %265 = vmatprep.subr.mxu0 0.0
    %266 = vmatpush1.msra.mxu0 %v71
    %267 = vmatprep.subr.mxu0 0.0
    %268 = vmatpush1.msra.mxu0 %v72
    %269 = vmatprep.subr.mxu0 0.0
    %270 = vmatpush1.msra.mxu0 %v73
    %271 = vmatprep.subr.mxu0 0.0
    %272 = vmatpush1.msra.mxu0 0.0
    %273 = vmatprep.subr.mxu0 0.0
    %274 = vmatpush1.msra.mxu0 0.0
    %275 = vmatprep.subr.mxu0 0.0
    %276 = vmatpush1.msra.mxu0 0.0
    %277 = vmatprep.subr.mxu0 0.0
    %278 = vmatpush1.msra.mxu0 0.0
    %279 = vmatprep.subr.mxu0 0.0
    %280 = vmatpush1.msra.mxu0 0.0
    %281 = vmatprep.subr.mxu0 0.0
    %282 = vmatpush1.msra.mxu0 0.0
    %283 = vmatprep.subr.mxu0 0.0
    %284 = vmatpush1.msra.mxu0 0.0
    %285 = vmatprep.subr.mxu0 0.0
    %286 = vmatpush1.msra.mxu0 0.0
    %287 = vmatprep.subr.mxu0 0.0
    %288 = vmatpush1.msra.mxu0 0.0
    %289 = vmatprep.subr.mxu0 0.0
    %290 = vmatpush1.msra.mxu0 0.0
    %291 = vmatprep.subr.mxu0 0.0
    %292 = vmatpush1.msra.mxu0 0.0
    %293 = vmatprep.subr.mxu0 0.0
    %294 = vmatpush1.msra.mxu0 0.0
    %295 = vmatprep.subr.mxu0 0.0
    %296 = vmatpush1.msra.mxu0 0.0
    %297 = vmatprep.subr.mxu0 0.0
    %298 = vmatpush1.msra.mxu0 0.0
    %299 = vmatprep.subr.mxu0 0.0
    %300 = vmatpush1.msra.mxu0 0.0
    %301 = vmatprep.subr.mxu0 0.0
    %302 = vmatpush1.msra.mxu0 0.0
    %303 = vmatprep.mubr.f32.mxu0 0.0
    %304 = vmatmul.mubr.f32.gmra.mrb[0].mxu0 %v234
    %v305 = vpop.f32.mrb[0].mxu0
    %v306 = vadd.f32 %v238, %v305
    %v307 = vpop.f32.mrb[0].mxu0
    %308 = vdwg.mxu0
    %309 = vst [vmem:[#allocation7] sm:$0xff] %v306
    // Predicated region
    $region18: #{tpu_custom_call.1} parent=1 // pred_check
      _
    $region19: #{tpu_custom_call.1} parent=1 // pred_check_branch
      %311 = sbr.rel (0) target = $region21
    $region20: #{tpu_custom_call.1} parent=1 // pred_region
      %s313 = ssub.s32 128, 32
      %314 = vsyncadd [#allocation4], %s313
      %s315 = sshll.u32 [#allocation7], 4
      %s316 = int_to_ptr.vmem [resolvable:$true] %s315
      %321 = dma.vmem_to_hbm [thread:$0]  %s316, 32, %s2, [#allocation4], 32, 32, 2
    $region21: #{tpu_custom_call.1} parent=1 // pred_fallthru
      _
    // Predicated region
    $region22: #{tpu_custom_call.1} parent=1 // pred_check
      _
    $region23: #{tpu_custom_call.1} parent=1 // pred_check_branch
      %323 = sbr.rel (0) target = $region25
    $region24: #{tpu_custom_call.1} parent=1 // pred_region
      %324 = dma.done [#allocation4], 128
    $region25: #{tpu_custom_call.1} parent=1 // pred_fallthru
      _
    %325 = vsyncpa [#allocation3], 1
    %326 = vsyncpa [#allocation6], 1
    %327 = vsyncpa [#allocation4], 1

</llo_original>
